<compile_context>
chip_gen: v7x
topology: tpu7x:2x2x1
jax: 0.10.0
libtpu: 0.0.40
codegen_flags: <defaults>
</compile_context>

<pallas_src>
import jax
import jax.numpy as jnp
from jax.experimental import pallas as pl
from jax.experimental.pallas import tpu as pltpu

LAW_DIM = 22
HID_DIM = 64
S_DIM = 64
POLICY_OUT = 2
VALUE_OUT = 1
HEAD_OUT = POLICY_OUT + VALUE_OUT   # fused policy||value head width = 3

# Sublane offsets (8-aligned) of each layer inside the packed weight slab.
W1_OFF = 0                          # rows  0:22
W2_OFF = 24                         # rows 24:88
WH_OFF = 88                         # rows 88:152
W_ROWS = WH_OFF + S_DIM             # 152


def net_kernel(x_ref, w_ref, b_ref, policy_ref, value_ref):
    """Whole forward in one straight-line body (no grid).

    x_ref      : (B, 22)   natural, unpadded input
    w_ref      : (152, 64) packed weight slab (enc0 / enc1 / fused head)
    b_ref      : (3, 64)   bias slab (b_enc0 / b_enc1 / b_head in lanes 0..2)
    policy_ref : (B, 2)
    value_ref  : (B, 1)
    """
    x = x_ref[...]                                                  # (B, 22)
    b = b_ref[...]                                                  # (3, 64)

    # Encoder layer 0: Linear(22, 64) + Tanh.  (Mosaic zero-pads the K=22
    # contraction internally; default matmul precision matches the JAX
    # reference — use precision=jax.lax.Precision.HIGHEST on all three dots
    # if strict fp32 parity with a PyTorch reference is required.)
    h1 = jnp.tanh(
        jnp.dot(x, w_ref[W1_OFF:W1_OFF + LAW_DIM, :],
                preferred_element_type=jnp.float32) + b[0:1, :]
    )                                                               # (B, 64)
    # Encoder layer 1: Linear(64, 64) + Tanh.
    enc = jnp.tanh(
        jnp.dot(h1, w_ref[W2_OFF:W2_OFF + HID_DIM, :],
                preferred_element_type=jnp.float32) + b[1:2, :]
    )                                                               # (B, 64)
    # Fused policy (lanes 0..1) + value (lane 2) head: Linear(64, 3), Identity.
    head = (
        jnp.dot(enc, w_ref[WH_OFF:WH_OFF + S_DIM, :],
                preferred_element_type=jnp.float32) + b[2:3, :]
    )                                                               # (B, 64)
    policy_ref[...] = head[:, :POLICY_OUT]
    value_ref[...] = head[:, POLICY_OUT:POLICY_OUT + VALUE_OUT]


def pack_params(params):
    """Pack the 8 Linear params into (w_slab, b_slab) ONCE (not per call)."""
    (w1, b1, w2, b2, wp, bp, wv, bv) = params
    w_slab = jnp.zeros((W_ROWS, HID_DIM), jnp.float32)
    w_slab = w_slab.at[W1_OFF:W1_OFF + LAW_DIM, :].set(w1)
    w_slab = w_slab.at[W2_OFF:W2_OFF + HID_DIM, :].set(w2)
    w_slab = w_slab.at[WH_OFF:WH_OFF + S_DIM, :POLICY_OUT].set(wp)
    w_slab = w_slab.at[WH_OFF:WH_OFF + S_DIM, POLICY_OUT:HEAD_OUT].set(wv)

    b_slab = jnp.zeros((3, HID_DIM), jnp.float32)
    b_slab = b_slab.at[0, :HID_DIM].set(b1[0])
    b_slab = b_slab.at[1, :S_DIM].set(b2[0])
    b_slab = b_slab.at[2, :POLICY_OUT].set(bp[0])
    b_slab = b_slab.at[2, POLICY_OUT].set(bv[0, 0])
    return w_slab, b_slab


@jax.jit
def net_forward_pallas(x, w_slab, b_slab):
    """Encoder + fused policy/value head in one gridless Pallas call.

    x: [B, LAW_DIM] float32   ->   (policy [B, 2], value [B, 1])
    """
    B = x.shape[0]
    # TODO(synk): once B per call exceeds ~1-2K rows per TensorCore, add a
    # batch grid axis (>=512-row blocks, dimension_semantics=("parallel",))
    # to engage the 2nd TensorCore on v7x; at small B a grid only adds
    # per-step pipeline overhead.
    policy, value = pl.pallas_call(
        net_kernel,
        out_shape=(
            jax.ShapeDtypeStruct((B, POLICY_OUT), jnp.float32),
            jax.ShapeDtypeStruct((B, VALUE_OUT), jnp.float32),
        ),
        in_specs=[
            pl.BlockSpec(memory_space=pltpu.MemorySpace.VMEM),
            pl.BlockSpec(memory_space=pltpu.MemorySpace.VMEM),
            pl.BlockSpec(memory_space=pltpu.MemorySpace.VMEM),
        ],
        out_specs=(
            pl.BlockSpec(memory_space=pltpu.MemorySpace.VMEM),
            pl.BlockSpec(memory_space=pltpu.MemorySpace.VMEM),
        ),
    )(x, w_slab, b_slab)
    return policy, value


def net_forward(x, w_slab, b_slab):
    """Full Net.forward semantics, torch-style `mean, variance = policy` unpack.

    - 1-D x (22,)  -> scalar mean, scalar variance, value of shape (1,)
    - 2-D x (B,22) -> unpack along dim 0 requires B == 2 (asserted).
    """
    if x.ndim == 1:
        policy, value = net_forward_pallas(x[None, :], w_slab, b_slab)
        return policy[0, 0], policy[0, 1], value[0]
    assert x.shape[0] == 2, (
        "torch-style `mean, variance = policy` unpack requires batch dim == 2"
    )
    policy, value = net_forward_pallas(x, w_slab, b_slab)
    return policy[0], policy[1], value


def init_params(key):
    """Deterministic init mimicking PyTorch Linear default (U(+/- 1/sqrt(fan_in))).

    Weights stored as [in, out] (already transposed relative to torch)."""
    def linear(key, fan_in, fan_out):
        kw, kb = jax.random.split(key)
        bound = 1.0 / (fan_in ** 0.5)
        w = jax.random.uniform(kw, (fan_in, fan_out), jnp.float32, -bound, bound)
        b = jax.random.uniform(kb, (1, fan_out), jnp.float32, -bound, bound)
        return w, b

    k1, k2, k3, k4 = jax.random.split(key, 4)
    w1, b1 = linear(k1, LAW_DIM, HID_DIM)    # encoder layer 0
    w2, b2 = linear(k2, HID_DIM, S_DIM)      # encoder layer 1
    wp, bp = linear(k3, S_DIM, POLICY_OUT)   # policy head
    wv, bv = linear(k4, S_DIM, VALUE_OUT)    # value head
    return (w1, b1, w2, b2, wp, bp, wv, bv)


def reference_policy_value(x, params):
    (w1, b1, w2, b2, wp, bp, wv, bv) = params
    h1 = jnp.tanh(x @ w1 + b1)
    enc = jnp.tanh(h1 @ w2 + b2)
    return enc @ wp + bp, enc @ wv + bv


def reference_forward(x, params):
    policy, value = reference_policy_value(x, params)
    return policy[0], policy[1], value


if __name__ == "__main__":
    key = jax.random.PRNGKey(0)
    k_param, k_x, k_xb = jax.random.split(key, 3)

    params = init_params(k_param)
    w_slab, b_slab = pack_params(params)   # packing/fusion done once at init

    # --- torch-semantics path: batch of 2 (required by `mean, variance = ...`) ---
    x = jax.random.normal(k_x, (2, LAW_DIM), jnp.float32)
    mean, variance, value = net_forward(x, w_slab, b_slab)
    jax.block_until_ready((mean, variance, value))

    r_mean, r_var, r_val = reference_forward(x, params)
    assert jnp.allclose(mean, r_mean, atol=1e-5, rtol=1e-5)
    assert jnp.allclose(variance, r_var, atol=1e-5, rtol=1e-5)
    assert jnp.allclose(value, r_val, atol=1e-5, rtol=1e-5)
    assert mean.shape == (2,) and variance.shape == (2,) and value.shape == (2, 1)

    # --- batched throughput path: many actor states per call amortize the
    #     (dominant) launch + DMA overhead; same gridless kernel body. ---
    xb = jax.random.normal(k_xb, (256, LAW_DIM), jnp.float32)
    pb, vb = net_forward_pallas(xb, w_slab, b_slab)
    jax.block_until_ready((pb, vb))

    r_pb, r_vb = reference_policy_value(xb, params)
    assert jnp.allclose(pb, r_pb, atol=1e-5, rtol=1e-5)
    assert jnp.allclose(vb, r_vb, atol=1e-5, rtol=1e-5)
    assert pb.shape == (256, POLICY_OUT) and vb.shape == (256, VALUE_OUT)

    print("KERNEL_OK")
</pallas_src>

<mosaic_0001>
module attributes {stable_mosaic.version = 11 : i64} {
  func.func @net_kernel(%arg0: memref<2x22xf32, #tpu.memory_space<vmem>>, %arg1: memref<152x64xf32, #tpu.memory_space<vmem>>, %arg2: memref<3x64xf32, #tpu.memory_space<vmem>>, %arg3: memref<2x2xf32, #tpu.memory_space<vmem>>, %arg4: memref<2x1xf32, #tpu.memory_space<vmem>>) attributes {dimension_semantics = [], scalar_prefetch = 0 : i64, scratch_operands = 0 : i64, tpu.core_type = #tpu.core_type<tc>} {
    %c0 = arith.constant 0 : index
    %c0_0 = arith.constant 0 : index
    %0 = vector.load %arg0[%c0, %c0_0] : memref<2x22xf32, #tpu.memory_space<vmem>>, vector<2x22xf32>
    %c0_1 = arith.constant 0 : index
    %c0_2 = arith.constant 0 : index
    %1 = vector.load %arg2[%c0_1, %c0_2] : memref<3x64xf32, #tpu.memory_space<vmem>>, vector<3x64xf32>
    %c0_3 = arith.constant 0 : index
    %c0_4 = arith.constant 0 : index
    %2 = vector.load %arg1[%c0_3, %c0_4] : memref<152x64xf32, #tpu.memory_space<vmem>>, vector<22x64xf32>
    %cst = arith.constant dense<0.000000e+00> : vector<2x64xf32>
    %3 = tpu.matmul %0, %2, %cst {dimension_numbers = #tpu.dot_dimension_numbers<[1], [0], [0], [1], [0, 0, 1, 1], [], []>} : vector<2x22xf32>, vector<22x64xf32>, vector<2x64xf32> -> vector<2x64xf32>
    %4 = vector.extract_strided_slice %1 {offsets = [0, 0], sizes = [1, 64], strides = [1, 1]} : vector<3x64xf32> to vector<1x64xf32>
    %5 = vector.broadcast %4 : vector<1x64xf32> to vector<2x64xf32>
    %6 = arith.addf %3, %5 : vector<2x64xf32>
    %7 = math.tanh %6 : vector<2x64xf32>
    %c24 = arith.constant 24 : index
    %c0_5 = arith.constant 0 : index
    %8 = vector.load %arg1[%c24, %c0_5] : memref<152x64xf32, #tpu.memory_space<vmem>>, vector<64x64xf32>
    %cst_6 = arith.constant dense<0.000000e+00> : vector<2x64xf32>
    %9 = tpu.matmul %7, %8, %cst_6 {dimension_numbers = #tpu.dot_dimension_numbers<[1], [0], [0], [1], [0, 0, 1, 1], [], []>} : vector<2x64xf32>, vector<64x64xf32>, vector<2x64xf32> -> vector<2x64xf32>
    %10 = vector.extract_strided_slice %1 {offsets = [1, 0], sizes = [1, 64], strides = [1, 1]} : vector<3x64xf32> to vector<1x64xf32>
    %11 = vector.broadcast %10 : vector<1x64xf32> to vector<2x64xf32>
    %12 = arith.addf %9, %11 : vector<2x64xf32>
    %13 = math.tanh %12 : vector<2x64xf32>
    %c88 = arith.constant 88 : index
    %c0_7 = arith.constant 0 : index
    %14 = vector.load %arg1[%c88, %c0_7] : memref<152x64xf32, #tpu.memory_space<vmem>>, vector<64x64xf32>
    %cst_8 = arith.constant dense<0.000000e+00> : vector<2x64xf32>
    %15 = tpu.matmul %13, %14, %cst_8 {dimension_numbers = #tpu.dot_dimension_numbers<[1], [0], [0], [1], [0, 0, 1, 1], [], []>} : vector<2x64xf32>, vector<64x64xf32>, vector<2x64xf32> -> vector<2x64xf32>
    %16 = vector.extract_strided_slice %1 {offsets = [2, 0], sizes = [1, 64], strides = [1, 1]} : vector<3x64xf32> to vector<1x64xf32>
    %17 = vector.broadcast %16 : vector<1x64xf32> to vector<2x64xf32>
    %18 = arith.addf %15, %17 : vector<2x64xf32>
    %19 = vector.extract_strided_slice %18 {offsets = [0, 0], sizes = [2, 2], strides = [1, 1]} : vector<2x64xf32> to vector<2x2xf32>
    %c0_9 = arith.constant 0 : index
    %c0_10 = arith.constant 0 : index
    %20 = vector.load %arg3[%c0_9, %c0_10] : memref<2x2xf32, #tpu.memory_space<vmem>>, vector<2x2xf32>
    tpu.vector_store %arg3[%c0_9, %c0_10], %19 {strides = array<i32>} : memref<2x2xf32, #tpu.memory_space<vmem>>, vector<2x2xf32>,
    %21 = vector.extract_strided_slice %18 {offsets = [0, 2], sizes = [2, 1], strides = [1, 1]} : vector<2x64xf32> to vector<2x1xf32>
    %c0_11 = arith.constant 0 : index
    %c0_12 = arith.constant 0 : index
    %22 = vector.load %arg4[%c0_11, %c0_12] : memref<2x1xf32, #tpu.memory_space<vmem>>, vector<2x1xf32>
    tpu.vector_store %arg4[%c0_11, %c0_12], %21 {strides = array<i32>} : memref<2x1xf32, #tpu.memory_space<vmem>>, vector<2x1xf32>,
    return
  }
}

</mosaic_0001>

<llo_original>
// kernel: net_forward_pallas.1
$region0: #{net_forward_pallas.1}
  #allocation0 [shape = 'u32[]', space=smem, size = 0x4, offset = 0x4, fixed_abs, tag = 'smem constant byte address 0x4 - core index']
  #allocation1 [shape = 'u32[144,128]{1,0:T(1,128)}', space=vmem, size = 0x12000, scoped, tag = 'internal scratch']
  %s0 = inlined_call_operand.vmem [shape: f32[2,22], index: 0, kind: input, shape index: {}]
  %s1 = inlined_call_operand.vmem [shape: f32[152,64], index: 1, kind: input, shape index: {}]
  %s2 = inlined_call_operand.vmem [shape: f32[3,64], index: 2, kind: input, shape index: {}]
  %s3 = inlined_call_operand.hbm [shape: f32[2,2], index: 3, kind: output, shape index: {0}]
  %s4 = inlined_call_operand.vmem [shape: f32[2,1], index: 4, kind: output, shape index: {1}]
  %5 = xla_tuple %s3, %s4
  %s6 = sld [smem:[#allocation0]]
  $region30: #{net_forward_pallas.1} parent=0
    _
  %s8 = ssub.s32 1, %s6
  %s9 = scalar_select 0, %s8, %s6
  $region1: #{net_forward_pallas.1} parent=0
    #allocation2 [shape = 'u8[1024]{0}', space=vmem, size = 0x400, scoped, tag = 'output window, operand 0, single buffered']
    #allocation3 [shape = 's32[1]{0}', space=sflag, size = 0x4, scoped, tag = 'scoped memory for net_forward_pallas.1']
    %10 = vsyncpa [#allocation3], 0
    // Predicated region
    $region2: #{net_forward_pallas.1} parent=1 // pred_check
      _
    $region3: #{net_forward_pallas.1} parent=1 // pred_check_branch
      %12 = sbr.rel (0) target = $region5
    $region4: #{net_forward_pallas.1} parent=1 // pred_region
      _
    $region5: #{net_forward_pallas.1} parent=1 // pred_fallthru
      _
    // Predicated region
    $region6: #{net_forward_pallas.1} parent=1 // pred_check
      _
    $region7: #{net_forward_pallas.1} parent=1 // pred_check_branch
      %14 = sbr.rel (0) target = $region9
    $region8: #{net_forward_pallas.1} parent=1 // pred_region
      _
    $region9: #{net_forward_pallas.1} parent=1 // pred_fallthru
      _
    // Predicated region
    $region10: #{net_forward_pallas.1} parent=1 // pred_check
      _
    $region11: #{net_forward_pallas.1} parent=1 // pred_check_branch
      %16 = sbr.rel (0) target = $region13
    $region12: #{net_forward_pallas.1} parent=1 // pred_region
      _
    $region13: #{net_forward_pallas.1} parent=1 // pred_fallthru
      _
    %v17 = vld [vmem:[%s0] sm:$0x3]
    %v18 = vld [vmem:[%s2] sm:$0x7]
    %v19 = vld [vmem:[%s1] sm:$0xff]
    %v20 = vld [vmem:[%s1 + $0x8] sm:$0xff]
    %v21 = vld [vmem:[%s1 + $0x10] sm:$0x3f]
    %v22 = vlaneseq
    %v23 = vshrl.u32 %v22, 7
    %v24 = vsub.s32 0, %v23
    %v25 = vrot.slane %v18, %v24
    %vm26 = vcmask 179200
    %v28 = vsel %vm26, %v17, 0
    %vm30 = vcmask 1045504
    %v32 = vsel %vm30, %v21, 0
    %34 = vmatprep.subr.mxu0 0.0
    %35 = vmatpush1.msra.mxu0 %v19
    %36 = vmatprep.subr.mxu0 0.0
    %37 = vmatpush1.msra.mxu0 %v20
    %38 = vmatprep.subr.mxu0 0.0
    %39 = vmatpush1.msra.mxu0 %v32
    %40 = vmatprep.subr.mxu0 0.0
    %41 = vmatpush1.msra.mxu0 0.0
    %42 = vmatprep.subr.mxu0 0.0
    %43 = vmatpush1.msra.mxu0 0.0
    %44 = vmatprep.subr.mxu0 0.0
    %45 = vmatpush1.msra.mxu0 0.0
    %46 = vmatprep.subr.mxu0 0.0
    %47 = vmatpush1.msra.mxu0 0.0
    %48 = vmatprep.subr.mxu0 0.0
    %49 = vmatpush1.msra.mxu0 0.0
    %50 = vmatprep.subr.mxu0 0.0
    %51 = vmatpush1.msra.mxu0 0.0
    %52 = vmatprep.subr.mxu0 0.0
    %53 = vmatpush1.msra.mxu0 0.0
    %54 = vmatprep.subr.mxu0 0.0
    %55 = vmatpush1.msra.mxu0 0.0
    %56 = vmatprep.subr.mxu0 0.0
    %57 = vmatpush1.msra.mxu0 0.0
    %58 = vmatprep.subr.mxu0 0.0
    %59 = vmatpush1.msra.mxu0 0.0
    %60 = vmatprep.subr.mxu0 0.0
    %61 = vmatpush1.msra.mxu0 0.0
    %62 = vmatprep.subr.mxu0 0.0
    %63 = vmatpush1.msra.mxu0 0.0
    %64 = vmatprep.subr.mxu0 0.0
    %65 = vmatpush1.msra.mxu0 0.0
    %66 = vmatprep.subr.mxu0 0.0
    %67 = vmatpush1.msra.mxu0 0.0
    %68 = vmatprep.subr.mxu0 0.0
    %69 = vmatpush1.msra.mxu0 0.0
    %70 = vmatprep.subr.mxu0 0.0
    %71 = vmatpush1.msra.mxu0 0.0
    %72 = vmatprep.subr.mxu0 0.0
    %73 = vmatpush1.msra.mxu0 0.0
    %74 = vmatprep.subr.mxu0 0.0
    %75 = vmatpush1.msra.mxu0 0.0
    %76 = vmatprep.subr.mxu0 0.0
    %77 = vmatpush1.msra.mxu0 0.0
    %78 = vmatprep.subr.mxu0 0.0
    %79 = vmatpush1.msra.mxu0 0.0
    %80 = vmatprep.subr.mxu0 0.0
    %81 = vmatpush1.msra.mxu0 0.0
    %82 = vmatprep.subr.mxu0 0.0
    %83 = vmatpush1.msra.mxu0 0.0
    %84 = vmatprep.subr.mxu0 0.0
    %85 = vmatpush1.msra.mxu0 0.0
    %86 = vmatprep.subr.mxu0 0.0
    %87 = vmatpush1.msra.mxu0 0.0
    %88 = vmatprep.subr.mxu0 0.0
    %89 = vmatpush1.msra.mxu0 0.0
    %90 = vmatprep.subr.mxu0 0.0
    %91 = vmatpush1.msra.mxu0 0.0
    %92 = vmatprep.subr.mxu0 0.0
    %93 = vmatpush1.msra.mxu0 0.0
    %94 = vmatprep.subr.mxu0 0.0
    %95 = vmatpush1.msra.mxu0 0.0
    %96 = vmatprep.subr.mxu0 0.0
    %97 = vmatpush1.msra.mxu0 0.0
    %98 = vmatprep.mubr.f32.mxu0 0.0
    %99 = vmatmul.mubr.f32.gmra.mrb[0].mxu0 %v28
    %v100 = vpop.f32.mrb[0].mxu0
    %v101 = vadd.f32 %v25, %v100
    %v102 = vpop.f32.mrb[0].mxu0
    %103 = vdwg.mxu0
    %v104 = vtanh.pop %v101
    %v105 = vld [vmem:[%s1 + $0x18] sm:$0xff]
    %v106 = vld [vmem:[%s1 + $0x20] sm:$0xff]
    %v107 = vld [vmem:[%s1 + $0x28] sm:$0xff]
    %v108 = vld [vmem:[%s1 + $0x30] sm:$0xff]
    %v109 = vld [vmem:[%s1 + $0x38] sm:$0xff]
    %v110 = vld [vmem:[%s1 + $0x40] sm:$0xff]
    %v111 = vld [vmem:[%s1 + $0x48] sm:$0xff]
    %v112 = vld [vmem:[%s1 + $0x50] sm:$0xff]
    %v113 = vlaneseq
    %v114 = vshrl.u32 %v113, 7
    %v115 = vsub.s32 1, %v114
    %v116 = vrot.slane %v18, %v115
    %vm117 = vcmask 523264
    %v119 = vsel %vm117, %v104, 0
    %121 = vmatprep.subr.mxu0 0.0
    %122 = vmatpush1.msra.mxu0 %v105
    %123 = vmatprep.subr.mxu0 0.0
    %124 = vmatpush1.msra.mxu0 %v106
    %125 = vmatprep.subr.mxu0 0.0
    %126 = vmatpush1.msra.mxu0 %v107
    %127 = vmatprep.subr.mxu0 0.0
    %128 = vmatpush1.msra.mxu0 %v108
    %129 = vmatprep.subr.mxu0 0.0
    %130 = vmatpush1.msra.mxu0 %v109
    %131 = vmatprep.subr.mxu0 0.0
    %132 = vmatpush1.msra.mxu0 %v110
    %133 = vmatprep.subr.mxu0 0.0
    %134 = vmatpush1.msra.mxu0 %v111
    %135 = vmatprep.subr.mxu0 0.0
    %136 = vmatpush1.msra.mxu0 %v112
    %137 = vmatprep.subr.mxu0 0.0
    %138 = vmatpush1.msra.mxu0 0.0
    %139 = vmatprep.subr.mxu0 0.0
    %140 = vmatpush1.msra.mxu0 0.0
    %141 = vmatprep.subr.mxu0 0.0
    %142 = vmatpush1.msra.mxu0 0.0
    %143 = vmatprep.subr.mxu0 0.0
    %144 = vmatpush1.msra.mxu0 0.0
    %145 = vmatprep.subr.mxu0 0.0
    %146 = vmatpush1.msra.mxu0 0.0
    %147 = vmatprep.subr.mxu0 0.0
    %148 = vmatpush1.msra.mxu0 0.0
    %149 = vmatprep.subr.mxu0 0.0
    %150 = vmatpush1.msra.mxu0 0.0
    %151 = vmatprep.subr.mxu0 0.0
    %152 = vmatpush1.msra.mxu0 0.0
    %153 = vmatprep.subr.mxu0 0.0
    %154 = vmatpush1.msra.mxu0 0.0
    %155 = vmatprep.subr.mxu0 0.0
    %156 = vmatpush1.msra.mxu0 0.0
    %157 = vmatprep.subr.mxu0 0.0
    %158 = vmatpush1.msra.mxu0 0.0
    %159 = vmatprep.subr.mxu0 0.0
    %160 = vmatpush1.msra.mxu0 0.0
    %161 = vmatprep.subr.mxu0 0.0
    %162 = vmatpush1.msra.mxu0 0.0
    %163 = vmatprep.subr.mxu0 0.0
    %164 = vmatpush1.msra.mxu0 0.0
    %165 = vmatprep.subr.mxu0 0.0
    %166 = vmatpush1.msra.mxu0 0.0
    %167 = vmatprep.subr.mxu0 0.0
    %168 = vmatpush1.msra.mxu0 0.0
    %169 = vmatprep.subr.mxu0 0.0
    %170 = vmatpush1.msra.mxu0 0.0
    %171 = vmatprep.subr.mxu0 0.0
    %172 = vmatpush1.msra.mxu0 0.0
    %173 = vmatprep.subr.mxu0 0.0
    %174 = vmatpush1.msra.mxu0 0.0
    %175 = vmatprep.subr.mxu0 0.0
    %176 = vmatpush1.msra.mxu0 0.0
    %177 = vmatprep.subr.mxu0 0.0
    %178 = vmatpush1.msra.mxu0 0.0
    %179 = vmatprep.subr.mxu0 0.0
    %180 = vmatpush1.msra.mxu0 0.0
    %181 = vmatprep.subr.mxu0 0.0
    %182 = vmatpush1.msra.mxu0 0.0
    %183 = vmatprep.subr.mxu0 0.0
    %184 = vmatpush1.msra.mxu0 0.0
    %185 = vmatprep.mubr.f32.mxu0 0.0
    %186 = vmatmul.mubr.f32.gmra.mrb[0].mxu0 %v119
    %v187 = vpop.f32.mrb[0].mxu0
    %v188 = vadd.f32 %v116, %v187
    %v189 = vpop.f32.mrb[0].mxu0
    %190 = vdwg.mxu0
    %v191 = vtanh.pop %v188
    %v192 = vld [vmem:[%s1 + $0x58] sm:$0xff]
    %v193 = vld [vmem:[%s1 + $0x60] sm:$0xff]
    %v194 = vld [vmem:[%s1 + $0x68] sm:$0xff]
    %v195 = vld [vmem:[%s1 + $0x70] sm:$0xff]
    %v196 = vld [vmem:[%s1 + $0x78] sm:$0xff]
    %v197 = vld [vmem:[%s1 + $0x80] sm:$0xff]
    %v198 = vld [vmem:[%s1 + $0x88] sm:$0xff]
    %v199 = vld [vmem:[%s1 + $0x90] sm:$0xff]
    %v200 = vlaneseq
    %v201 = vshrl.u32 %v200, 7
    %v202 = vsub.s32 2, %v201
    %v203 = vrot.slane %v18, %v202
    %v205 = vsel %vm117, %v191, 0
    %207 = vmatprep.subr.mxu0 0.0
    %208 = vmatpush1.msra.mxu0 %v192
    %209 = vmatprep.subr.mxu0 0.0
    %210 = vmatpush1.msra.mxu0 %v193
    %211 = vmatprep.subr.mxu0 0.0
    %212 = vmatpush1.msra.mxu0 %v194
    %213 = vmatprep.subr.mxu0 0.0
    %214 = vmatpush1.msra.mxu0 %v195
    %215 = vmatprep.subr.mxu0 0.0
    %216 = vmatpush1.msra.mxu0 %v196
    %217 = vmatprep.subr.mxu0 0.0
    %218 = vmatpush1.msra.mxu0 %v197
    %219 = vmatprep.subr.mxu0 0.0
    %220 = vmatpush1.msra.mxu0 %v198
    %221 = vmatprep.subr.mxu0 0.0
    %222 = vmatpush1.msra.mxu0 %v199
    %223 = vmatprep.subr.mxu0 0.0
    %224 = vmatpush1.msra.mxu0 0.0
    %225 = vmatprep.subr.mxu0 0.0
    %226 = vmatpush1.msra.mxu0 0.0
    %227 = vmatprep.subr.mxu0 0.0
    %228 = vmatpush1.msra.mxu0 0.0
    %229 = vmatprep.subr.mxu0 0.0
    %230 = vmatpush1.msra.mxu0 0.0
    %231 = vmatprep.subr.mxu0 0.0
    %232 = vmatpush1.msra.mxu0 0.0
    %233 = vmatprep.subr.mxu0 0.0
    %234 = vmatpush1.msra.mxu0 0.0
    %235 = vmatprep.subr.mxu0 0.0
    %236 = vmatpush1.msra.mxu0 0.0
    %237 = vmatprep.subr.mxu0 0.0
    %238 = vmatpush1.msra.mxu0 0.0
    %239 = vmatprep.subr.mxu0 0.0
    %240 = vmatpush1.msra.mxu0 0.0
    %241 = vmatprep.subr.mxu0 0.0
    %242 = vmatpush1.msra.mxu0 0.0
    %243 = vmatprep.subr.mxu0 0.0
    %244 = vmatpush1.msra.mxu0 0.0
    %245 = vmatprep.subr.mxu0 0.0
    %246 = vmatpush1.msra.mxu0 0.0
    %247 = vmatprep.subr.mxu0 0.0
    %248 = vmatpush1.msra.mxu0 0.0
    %249 = vmatprep.subr.mxu0 0.0
    %250 = vmatpush1.msra.mxu0 0.0
    %251 = vmatprep.subr.mxu0 0.0
    %252 = vmatpush1.msra.mxu0 0.0
    %253 = vmatprep.subr.mxu0 0.0
    %254 = vmatpush1.msra.mxu0 0.0
    %255 = vmatprep.subr.mxu0 0.0
    %256 = vmatpush1.msra.mxu0 0.0
    %257 = vmatprep.subr.mxu0 0.0
    %258 = vmatpush1.msra.mxu0 0.0
    %259 = vmatprep.subr.mxu0 0.0
    %260 = vmatpush1.msra.mxu0 0.0
    %261 = vmatprep.subr.mxu0 0.0
    %262 = vmatpush1.msra.mxu0 0.0
    %263 = vmatprep.subr.mxu0 0.0
    %264 = vmatpush1.msra.mxu0 0.0
    %265 = vmatprep.subr.mxu0 0.0
    %266 = vmatpush1.msra.mxu0 0.0
    %267 = vmatprep.subr.mxu0 0.0
    %268 = vmatpush1.msra.mxu0 0.0
    %269 = vmatprep.subr.mxu0 0.0
    %270 = vmatpush1.msra.mxu0 0.0
    %271 = vmatprep.mubr.f32.mxu0 0.0
    %272 = vmatmul.mubr.f32.gmra.mrb[0].mxu0 %v205
    %v273 = vpop.f32.mrb[0].mxu0
    %v274 = vadd.f32 %v203, %v273
    %v275 = vpop.f32.mrb[0].mxu0
    %276 = vdwg.mxu0
    %vm277 = vcmask 9216
    %278 = vst.msk [vmem:[#allocation2] sm:$0x3] %vm277, %v274
    %280 = vrot.lane.b32.xlu0 %v274, 126
    %v281 = vpop.permute.xlu0 %280
    %vm283 = vcmask 1024
    %284 = vst.msk [vmem:[%s4] sm:$0x3] %vm283, %v281
    // Predicated region
    $region14: #{net_forward_pallas.1} parent=1 // pred_check
      _
    $region15: #{net_forward_pallas.1} parent=1 // pred_check_branch
      %286 = sbr.rel (0) target = $region17
    $region16: #{net_forward_pallas.1} parent=1 // pred_region
      %s288 = ssub.s32 32, 32
      %289 = vsyncadd [#allocation3], %s288
      %s291 = sshll.u32 [#allocation2], 4
      %s292 = int_to_ptr.vmem [resolvable:$true] %s291
      %294 = dma.vmem_to_hbm [thread:$0]  %s292, 32, %s3, [#allocation3]
    $region17: #{net_forward_pallas.1} parent=1 // pred_fallthru
      _
    // Predicated region
    $region18: #{net_forward_pallas.1} parent=1 // pred_check
      _
    $region19: #{net_forward_pallas.1} parent=1 // pred_check_branch
      %296 = sbr.rel (0) target = $region21
    $region20: #{net_forward_pallas.1} parent=1 // pred_region
      _
    $region21: #{net_forward_pallas.1} parent=1 // pred_fallthru
      _
    // Predicated region
    $region22: #{net_forward_pallas.1} parent=1 // pred_check
      _
    $region23: #{net_forward_pallas.1} parent=1 // pred_check_branch
      %298 = sbr.rel (0) target = $region25
    $region24: #{net_forward_pallas.1} parent=1 // pred_region
      %299 = dma.done [#allocation3], 32
    $region25: #{net_forward_pallas.1} parent=1 // pred_fallthru
      _
    // Predicated region
    $region26: #{net_forward_pallas.1} parent=1 // pred_check
      _
    $region27: #{net_forward_pallas.1} parent=1 // pred_check_branch
      %301 = sbr.rel (0) target = $region29
    $region28: #{net_forward_pallas.1} parent=1 // pred_region
      _
    $region29: #{net_forward_pallas.1} parent=1 // pred_fallthru
      _
    %302 = vsyncpa [#allocation3], 1

</llo_original>
